<compile_context>
chip_gen: v7x
topology: tpu7x:2x2x1
jax: 0.10.0
libtpu: 0.0.40
codegen_flags: <defaults>
</compile_context>

<pallas_src>
import jax
import jax.numpy as jnp
from jax.experimental import pallas as pl

_INV_SQRT2 = 0.7071067811865476


def _layernorm(x, w, b, eps=1e-5):
    mu = jnp.mean(x, axis=-1, keepdims=True)
    var = jnp.mean((x - mu) ** 2, axis=-1, keepdims=True)
    return (x - mu) * jax.lax.rsqrt(var + eps) * w + b


def _gelu_exact(x):
    return 0.5 * x * (1.0 + jax.lax.erf(x * _INV_SQRT2))


def make_vit_kernel(C, T, E, dff, hid, ncls):
    """Kernel factory; all dims are static Python ints baked into the trace."""

    def vit_kernel(x_ref, w32_ref, w64_ref, wcls_ref, vec_ref, out_ref):
        f32 = jnp.float32
        x = x_ref[...]                                    # (C, T)

        # -- carve the packed weight slabs (static, sublane-aligned offsets) --
        wpe = w32_ref[0:T, :]                             # (T, E)   in->out
        wvo = w32_ref[T:T + E, :]                         # (E, E)   folded V@O
        wff2 = w32_ref[T + E:T + E + dff, :]              # (dff, E)
        wff1 = w64_ref[0:E, 0:dff]                        # (E, dff)
        fc1w = w64_ref[E:2 * E, 0:hid]                    # (E, hid)
        wcls = wcls_ref[...]                              # (hid, ncls)

        # -- per-parameter Ref slices from the small-parameter slab --
        posb = vec_ref[0:C, 0:E]                          # pos + bpe   (C, E)
        bvo = vec_ref[C + 0:C + 1, 0:E]                   # bv@wo^T+bo  (1, E)
        ln1w = vec_ref[C + 1:C + 2, 0:E]
        ln1b = vec_ref[C + 2:C + 3, 0:E]
        ln2w = vec_ref[C + 3:C + 4, 0:E]
        ln2b = vec_ref[C + 4:C + 5, 0:E]
        bff1 = vec_ref[C + 5:C + 6, 0:dff]
        bff2 = vec_ref[C + 6:C + 7, 0:E]
        fc1b = vec_ref[C + 7:C + 8, 0:hid]
        fc2b = vec_ref[C + 8:C + 9, 0:ncls]

        # patch_embedding: Linear(timewin -> embed_dim), + (pos + bias) folded.
        h = jnp.dot(x, wpe, preferred_element_type=f32) + posb         # (C, E)

        # ---- TransformerEncoderLayer (post-norm, relu FF, no dropout) ----
        # Seq-len-1 attention: softmax over one key == 1.0, so
        # attn_out = out_proj(V) = h @ (wv^T @ wo^T) + (bv @ wo^T + bo).
        attn = jnp.dot(h, wvo, preferred_element_type=f32) + bvo
        h = _layernorm(h + attn, ln1w, ln1b)

        ff = jnp.dot(h, wff1, preferred_element_type=f32) + bff1
        ff = jnp.maximum(ff, 0.0)                                       # relu
        ff = jnp.dot(ff, wff2, preferred_element_type=f32) + bff2
        h = _layernorm(h + ff, ln2w, ln2b)

        # AvgPool1d(1) == identity.  Head: fc_1 -> GELU -> fc_2 -> softmax.
        z = jnp.dot(h, fc1w, preferred_element_type=f32) + fc1b
        z = _gelu_exact(z)
        z = jnp.dot(z, wcls, preferred_element_type=f32) + fc2b
        z = z - jnp.max(z, axis=-1, keepdims=True)
        ez = jnp.exp(z)
        out_ref[...] = ez / jnp.sum(ez, axis=-1, keepdims=True)  # exact recip

    return vit_kernel


def pack_params(p):
    """One-time host-side packing: pre-transpose every weight to (in, out),
    fold the degenerate attention (wvo / bvo) and pos+bpe, and concatenate
    everything into a handful of lane-friendly slabs (5 kernel inputs)."""
    E, T = p["wpe"].shape
    C = p["pos"].shape[0]
    dff = p["wff1"].shape[0]
    hid = p["fc1w"].shape[0]
    ncls = p["fc2w"].shape[0]

    def padw(a, w):
        return jnp.pad(a, ((0, 0), (0, w - a.shape[1])))

    # Fold seq-len-1 attention:  attn = h @ wvo + bvo   (exact in exact arith)
    wv_t = p["wqkv"][2 * E:, :].T                       # (E, E)  in->out
    wvo = wv_t @ p["wo"].T                              # (E, E)  in->out
    bvo = p["bqkv"][:, 2 * E:] @ p["wo"].T + p["bo"]    # (1, E)

    # Fold patch-embedding bias into the position embedding.
    posb = p["pos"] + p["bpe"]                          # (C, E)

    # width-E weight slab: wpe^T | wvo | wff2^T   (rows: T + E + dff)
    w32 = jnp.concatenate([p["wpe"].T, wvo, p["wff2"].T], axis=0)

    # wide weight slab: wff1^T | fc1w^T   (rows: 2E, width max(dff, hid))
    W64 = max(dff, hid)
    w64 = jnp.concatenate([padw(p["wff1"].T, W64), padw(p["fc1w"].T, W64)],
                          axis=0)

    wcls = p["fc2w"].T                                  # (hid, ncls)

    # small-parameter slab: posb + folded/plain biases + LN affine.
    VW = max(E, dff, hid, ncls)
    rows = [
        posb,                                           # (C, E)
        bvo,
        p["ln1w"], p["ln1b"], p["ln2w"], p["ln2b"],
        p["bff1"], p["bff2"], p["fc1b"], p["fc2b"],
    ]
    vec = jnp.concatenate([padw(r, VW) for r in rows], axis=0)   # (C+9, VW)

    return {"w32": w32, "w64": w64, "wcls": wcls, "vec": vec,
            "dims": (C, T, E, dff, hid, ncls)}


def transformer_forward(x, packed):
    """x: (T, P) float32 — same as the PyTorch forward. Returns (1, P, 3)."""
    C, T, E, dff, hid, ncls = packed["dims"]
    xT = x.T                                          # permute(1, 0) -> (C, T)
    kernel = make_vit_kernel(C, T, E, dff, hid, ncls)

    # Advisory cost hint so XLA schedules this ~µs custom call sensibly.
    flops = 2 * C * (T * E + E * E + 2 * E * dff + E * hid + hid * ncls)
    transcendentals = C * (hid + ncls + 2)            # erf + exp + 2x rsqrt
    bytes_accessed = 4 * (xT.size + packed["w32"].size + packed["w64"].size
                          + packed["wcls"].size + packed["vec"].size + C * ncls)

    # Gridless single invocation: every input is a whole-array VMEM block
    # (total working set ~40 KB), so there is no per-input double-buffering
    # bookkeeping and no (8,128) block constraint to satisfy.
    out = pl.pallas_call(
        kernel,
        out_shape=jax.ShapeDtypeStruct((C, ncls), jnp.float32),
        cost_estimate=pl.CostEstimate(flops=flops,
                                      transcendentals=transcendentals,
                                      bytes_accessed=bytes_accessed),
    )(xT, packed["w32"], packed["w64"], packed["wcls"], packed["vec"])
    return out.reshape(1, C, ncls)


def reference_forward(x, p, num_heads):
    """Pure-JAX reference mirroring the PyTorch forward (with full attention)."""
    h = x.T @ p["wpe"].T + p["bpe"]
    h = h + p["pos"]
    C, E = h.shape
    hd = E // num_heads
    qkv = h @ p["wqkv"].T + p["bqkv"]                       # (C, 3E)
    q, k, v = qkv[:, :E], qkv[:, E:2 * E], qkv[:, 2 * E:]
    qh = q.reshape(C, num_heads, 1, hd)
    kh = k.reshape(C, num_heads, 1, hd)
    vh = v.reshape(C, num_heads, 1, hd)
    scores = jnp.einsum("chqd,chkd->chqk", qh, kh) / jnp.sqrt(hd)
    w = jax.nn.softmax(scores, axis=-1)                     # == 1 for seq len 1
    attn = jnp.einsum("chqk,chkd->chqd", w, vh).reshape(C, E)
    attn = attn @ p["wo"].T + p["bo"]

    def ln(t, w_, b_):
        mu = jnp.mean(t, axis=-1, keepdims=True)
        var = jnp.mean((t - mu) ** 2, axis=-1, keepdims=True)
        return (t - mu) / jnp.sqrt(var + 1e-5) * w_ + b_

    h = ln(h + attn, p["ln1w"], p["ln1b"])
    ff = jnp.maximum(h @ p["wff1"].T + p["bff1"], 0.0) @ p["wff2"].T + p["bff2"]
    h = ln(h + ff, p["ln2w"], p["ln2b"])
    z = h @ p["fc1w"].T + p["fc1b"]
    z = jax.nn.gelu(z, approximate=False)
    z = z @ p["fc2w"].T + p["fc2b"]
    return jax.nn.softmax(z, axis=-1).reshape(1, C, 3)


def init_params(key, channel, embed_dim, timewin, dff):
    ks = jax.random.split(key, 16)
    s = 0.05
    f32 = jnp.float32

    def rn(k, shape):
        return (s * jax.random.normal(k, shape)).astype(f32)

    return {
        "wpe":  rn(ks[0], (embed_dim, timewin)),
        "bpe":  rn(ks[1], (1, embed_dim)),
        "pos":  rn(ks[2], (channel, embed_dim)),          # (1, C, E) squeezed
        "wqkv": rn(ks[3], (3 * embed_dim, embed_dim)),
        "bqkv": rn(ks[4], (1, 3 * embed_dim)),
        "wo":   rn(ks[5], (embed_dim, embed_dim)),
        "bo":   rn(ks[6], (1, embed_dim)),
        "ln1w": jnp.ones((1, embed_dim), f32),
        "ln1b": jnp.zeros((1, embed_dim), f32),
        "ln2w": jnp.ones((1, embed_dim), f32),
        "ln2b": jnp.zeros((1, embed_dim), f32),
        "wff1": rn(ks[7], (dff, embed_dim)),
        "bff1": rn(ks[8], (1, dff)),
        "wff2": rn(ks[9], (embed_dim, dff)),
        "bff2": rn(ks[10], (1, embed_dim)),
        "fc1w": rn(ks[11], (64, embed_dim)),
        "fc1b": rn(ks[12], (1, 64)),
        "fc2w": rn(ks[13], (3, 64)),
        "fc2b": rn(ks[14], (1, 3)),
        # cls_token exists in the module but is unused in forward; omitted.
    }


if __name__ == "__main__":
    # Small shapes consistent with the module (defaults scaled down):
    # channel=8, timewin=16, embed_dim=32, num_heads=4, dim_feedforward=64.
    channel, embed_dim, timewin, num_heads, dff = 8, 32, 16, 4, 64

    key = jax.random.PRNGKey(0)
    kx, kp = jax.random.split(key)
    x = jax.random.normal(kx, (timewin, channel), dtype=jnp.float32)  # (T, P)
    params = init_params(kp, channel, embed_dim, timewin, dff)
    packed = pack_params(params)   # one-time host-side layout plumbing

    out = jax.block_until_ready(transformer_forward(x, packed))
    ref = jax.block_until_ready(reference_forward(x, params, num_heads))

    assert out.shape == (1, channel, 3), out.shape
    assert jnp.all(jnp.isfinite(out))
    # Exact reciprocal in the final softmax -> rows sum to 1 at f32 precision.
    assert jnp.allclose(jnp.sum(out, axis=-1), 1.0, atol=1e-5)
    assert jnp.allclose(out, ref, rtol=2e-3, atol=1e-4), (
        f"max abs err {jnp.max(jnp.abs(out - ref))}")
    print("KERNEL_OK")
</pallas_src>

<mosaic_0001>
module attributes {stable_mosaic.version = 11 : i64} {
  func.func @vit_kernel(%arg0: memref<8x16xf32, #tpu.memory_space<vmem>>, %arg1: memref<112x32xf32, #tpu.memory_space<vmem>>, %arg2: memref<64x64xf32, #tpu.memory_space<vmem>>, %arg3: memref<64x3xf32, #tpu.memory_space<vmem>>, %arg4: memref<17x64xf32, #tpu.memory_space<vmem>>, %arg5: memref<8x3xf32, #tpu.memory_space<vmem>>) attributes {dimension_semantics = [], scalar_prefetch = 0 : i64, scratch_operands = 0 : i64, tpu.core_type = #tpu.core_type<tc>} {
    %c0 = arith.constant 0 : index
    %c0_0 = arith.constant 0 : index
    %0 = vector.load %arg0[%c0, %c0_0] : memref<8x16xf32, #tpu.memory_space<vmem>>, vector<8x16xf32>
    %c0_1 = arith.constant 0 : index
    %c0_2 = arith.constant 0 : index
    %1 = vector.load %arg1[%c0_1, %c0_2] : memref<112x32xf32, #tpu.memory_space<vmem>>, vector<16x32xf32>
    %c16 = arith.constant 16 : index
    %c0_3 = arith.constant 0 : index
    %2 = vector.load %arg1[%c16, %c0_3] : memref<112x32xf32, #tpu.memory_space<vmem>>, vector<32x32xf32>
    %c48 = arith.constant 48 : index
    %c0_4 = arith.constant 0 : index
    %3 = vector.load %arg1[%c48, %c0_4] : memref<112x32xf32, #tpu.memory_space<vmem>>, vector<64x32xf32>
    %c0_5 = arith.constant 0 : index
    %c0_6 = arith.constant 0 : index
    %4 = vector.load %arg2[%c0_5, %c0_6] : memref<64x64xf32, #tpu.memory_space<vmem>>, vector<32x64xf32>
    %c32 = arith.constant 32 : index
    %c0_7 = arith.constant 0 : index
    %5 = vector.load %arg2[%c32, %c0_7] : memref<64x64xf32, #tpu.memory_space<vmem>>, vector<32x64xf32>
    %c0_8 = arith.constant 0 : index
    %c0_9 = arith.constant 0 : index
    %6 = vector.load %arg3[%c0_8, %c0_9] : memref<64x3xf32, #tpu.memory_space<vmem>>, vector<64x3xf32>
    %c0_10 = arith.constant 0 : index
    %c0_11 = arith.constant 0 : index
    %7 = vector.load %arg4[%c0_10, %c0_11] : memref<17x64xf32, #tpu.memory_space<vmem>>, vector<8x32xf32>
    %c8 = arith.constant 8 : index
    %c0_12 = arith.constant 0 : index
    %8 = vector.load %arg4[%c8, %c0_12] : memref<17x64xf32, #tpu.memory_space<vmem>>, vector<1x32xf32>
    %c9 = arith.constant 9 : index
    %c0_13 = arith.constant 0 : index
    %9 = vector.load %arg4[%c9, %c0_13] : memref<17x64xf32, #tpu.memory_space<vmem>>, vector<1x32xf32>
    %c10 = arith.constant 10 : index
    %c0_14 = arith.constant 0 : index
    %10 = vector.load %arg4[%c10, %c0_14] : memref<17x64xf32, #tpu.memory_space<vmem>>, vector<1x32xf32>
    %c11 = arith.constant 11 : index
    %c0_15 = arith.constant 0 : index
    %11 = vector.load %arg4[%c11, %c0_15] : memref<17x64xf32, #tpu.memory_space<vmem>>, vector<1x32xf32>
    %c12 = arith.constant 12 : index
    %c0_16 = arith.constant 0 : index
    %12 = vector.load %arg4[%c12, %c0_16] : memref<17x64xf32, #tpu.memory_space<vmem>>, vector<1x32xf32>
    %c13 = arith.constant 13 : index
    %c0_17 = arith.constant 0 : index
    %13 = vector.load %arg4[%c13, %c0_17] : memref<17x64xf32, #tpu.memory_space<vmem>>, vector<1x64xf32>
    %c14 = arith.constant 14 : index
    %c0_18 = arith.constant 0 : index
    %14 = vector.load %arg4[%c14, %c0_18] : memref<17x64xf32, #tpu.memory_space<vmem>>, vector<1x32xf32>
    %c15 = arith.constant 15 : index
    %c0_19 = arith.constant 0 : index
    %15 = vector.load %arg4[%c15, %c0_19] : memref<17x64xf32, #tpu.memory_space<vmem>>, vector<1x64xf32>
    %c16_20 = arith.constant 16 : index
    %c0_21 = arith.constant 0 : index
    %16 = vector.load %arg4[%c16_20, %c0_21] : memref<17x64xf32, #tpu.memory_space<vmem>>, vector<1x3xf32>
    %cst = arith.constant dense<0.000000e+00> : vector<8x32xf32>
    %17 = tpu.matmul %0, %1, %cst {dimension_numbers = #tpu.dot_dimension_numbers<[1], [0], [0], [1], [0, 0, 1, 1], [], []>} : vector<8x16xf32>, vector<16x32xf32>, vector<8x32xf32> -> vector<8x32xf32>
    %18 = arith.addf %17, %7 : vector<8x32xf32>
    %cst_22 = arith.constant dense<0.000000e+00> : vector<8x32xf32>
    %19 = tpu.matmul %18, %2, %cst_22 {dimension_numbers = #tpu.dot_dimension_numbers<[1], [0], [0], [1], [0, 0, 1, 1], [], []>} : vector<8x32xf32>, vector<32x32xf32>, vector<8x32xf32> -> vector<8x32xf32>
    %20 = vector.broadcast %8 : vector<1x32xf32> to vector<8x32xf32>
    %21 = arith.addf %19, %20 : vector<8x32xf32>
    %22 = arith.addf %18, %21 : vector<8x32xf32>
    %cst_23 = arith.constant dense<0.000000e+00> : vector<8xf32>
    %23 = vector.multi_reduction <add>, %22, %cst_23 [1] : vector<8x32xf32> to vector<8xf32>
    %24 = vector.shape_cast %23 : vector<8xf32> to vector<8x1xf32>
    %cst_24 = arith.constant 3.200000e+01 : f32
    %25 = vector.broadcast %cst_24 : f32 to vector<8x1xf32>
    %26 = arith.divf %24, %25 : vector<8x1xf32>
    %27 = vector.broadcast %26 : vector<8x1xf32> to vector<8x32xf32>
    %28 = arith.subf %22, %27 : vector<8x32xf32>
    %29 = arith.mulf %28, %28 : vector<8x32xf32>
    %cst_25 = arith.constant dense<0.000000e+00> : vector<8xf32>
    %30 = vector.multi_reduction <add>, %29, %cst_25 [1] : vector<8x32xf32> to vector<8xf32>
    %31 = vector.shape_cast %30 : vector<8xf32> to vector<8x1xf32>
    %cst_26 = arith.constant 3.200000e+01 : f32
    %32 = vector.broadcast %cst_26 : f32 to vector<8x1xf32>
    %33 = arith.divf %31, %32 : vector<8x1xf32>
    %34 = vector.broadcast %26 : vector<8x1xf32> to vector<8x32xf32>
    %35 = arith.subf %22, %34 : vector<8x32xf32>
    %cst_27 = arith.constant 9.99999974E-6 : f32
    %36 = vector.broadcast %cst_27 : f32 to vector<8x1xf32>
    %37 = arith.addf %33, %36 : vector<8x1xf32>
    %38 = math.rsqrt %37 : vector<8x1xf32>
    %39 = vector.broadcast %38 : vector<8x1xf32> to vector<8x32xf32>
    %40 = arith.mulf %35, %39 : vector<8x32xf32>
    %41 = vector.broadcast %9 : vector<1x32xf32> to vector<8x32xf32>
    %42 = arith.mulf %40, %41 : vector<8x32xf32>
    %43 = vector.broadcast %10 : vector<1x32xf32> to vector<8x32xf32>
    %44 = arith.addf %42, %43 : vector<8x32xf32>
    %cst_28 = arith.constant dense<0.000000e+00> : vector<8x64xf32>
    %45 = tpu.matmul %44, %4, %cst_28 {dimension_numbers = #tpu.dot_dimension_numbers<[1], [0], [0], [1], [0, 0, 1, 1], [], []>} : vector<8x32xf32>, vector<32x64xf32>, vector<8x64xf32> -> vector<8x64xf32>
    %46 = vector.broadcast %13 : vector<1x64xf32> to vector<8x64xf32>
    %47 = arith.addf %45, %46 : vector<8x64xf32>
    %cst_29 = arith.constant 0.000000e+00 : f32
    %48 = vector.broadcast %cst_29 : f32 to vector<8x64xf32>
    %49 = arith.maximumf %47, %48 : vector<8x64xf32>
    %cst_30 = arith.constant dense<0.000000e+00> : vector<8x32xf32>
    %50 = tpu.matmul %49, %3, %cst_30 {dimension_numbers = #tpu.dot_dimension_numbers<[1], [0], [0], [1], [0, 0, 1, 1], [], []>} : vector<8x64xf32>, vector<64x32xf32>, vector<8x32xf32> -> vector<8x32xf32>
    %51 = vector.broadcast %14 : vector<1x32xf32> to vector<8x32xf32>
    %52 = arith.addf %50, %51 : vector<8x32xf32>
    %53 = arith.addf %44, %52 : vector<8x32xf32>
    %cst_31 = arith.constant dense<0.000000e+00> : vector<8xf32>
    %54 = vector.multi_reduction <add>, %53, %cst_31 [1] : vector<8x32xf32> to vector<8xf32>
    %55 = vector.shape_cast %54 : vector<8xf32> to vector<8x1xf32>
    %cst_32 = arith.constant 3.200000e+01 : f32
    %56 = vector.broadcast %cst_32 : f32 to vector<8x1xf32>
    %57 = arith.divf %55, %56 : vector<8x1xf32>
    %58 = vector.broadcast %57 : vector<8x1xf32> to vector<8x32xf32>
    %59 = arith.subf %53, %58 : vector<8x32xf32>
    %60 = arith.mulf %59, %59 : vector<8x32xf32>
    %cst_33 = arith.constant dense<0.000000e+00> : vector<8xf32>
    %61 = vector.multi_reduction <add>, %60, %cst_33 [1] : vector<8x32xf32> to vector<8xf32>
    %62 = vector.shape_cast %61 : vector<8xf32> to vector<8x1xf32>
    %cst_34 = arith.constant 3.200000e+01 : f32
    %63 = vector.broadcast %cst_34 : f32 to vector<8x1xf32>
    %64 = arith.divf %62, %63 : vector<8x1xf32>
    %65 = vector.broadcast %57 : vector<8x1xf32> to vector<8x32xf32>
    %66 = arith.subf %53, %65 : vector<8x32xf32>
    %cst_35 = arith.constant 9.99999974E-6 : f32
    %67 = vector.broadcast %cst_35 : f32 to vector<8x1xf32>
    %68 = arith.addf %64, %67 : vector<8x1xf32>
    %69 = math.rsqrt %68 : vector<8x1xf32>
    %70 = vector.broadcast %69 : vector<8x1xf32> to vector<8x32xf32>
    %71 = arith.mulf %66, %70 : vector<8x32xf32>
    %72 = vector.broadcast %11 : vector<1x32xf32> to vector<8x32xf32>
    %73 = arith.mulf %71, %72 : vector<8x32xf32>
    %74 = vector.broadcast %12 : vector<1x32xf32> to vector<8x32xf32>
    %75 = arith.addf %73, %74 : vector<8x32xf32>
    %cst_36 = arith.constant dense<0.000000e+00> : vector<8x64xf32>
    %76 = tpu.matmul %75, %5, %cst_36 {dimension_numbers = #tpu.dot_dimension_numbers<[1], [0], [0], [1], [0, 0, 1, 1], [], []>} : vector<8x32xf32>, vector<32x64xf32>, vector<8x64xf32> -> vector<8x64xf32>
    %77 = vector.broadcast %15 : vector<1x64xf32> to vector<8x64xf32>
    %78 = arith.addf %76, %77 : vector<8x64xf32>
    %cst_37 = arith.constant 5.000000e-01 : f32
    %79 = vector.broadcast %cst_37 : f32 to vector<8x64xf32>
    %80 = arith.mulf %79, %78 : vector<8x64xf32>
    %cst_38 = arith.constant 0.707106769 : f32
    %81 = vector.broadcast %cst_38 : f32 to vector<8x64xf32>
    %82 = arith.mulf %78, %81 : vector<8x64xf32>
    %83 = math.erf %82 : vector<8x64xf32>
    %cst_39 = arith.constant 1.000000e+00 : f32
    %84 = vector.broadcast %cst_39 : f32 to vector<8x64xf32>
    %85 = arith.addf %84, %83 : vector<8x64xf32>
    %86 = arith.mulf %80, %85 : vector<8x64xf32>
    %cst_40 = arith.constant dense<0.000000e+00> : vector<8x3xf32>
    %87 = tpu.matmul %86, %6, %cst_40 {dimension_numbers = #tpu.dot_dimension_numbers<[1], [0], [0], [1], [0, 0, 1, 1], [], []>} : vector<8x64xf32>, vector<64x3xf32>, vector<8x3xf32> -> vector<8x3xf32>
    %88 = vector.broadcast %16 : vector<1x3xf32> to vector<8x3xf32>
    %89 = arith.addf %87, %88 : vector<8x3xf32>
    %cst_41 = arith.constant dense<0xFF800000> : vector<8xf32>
    %90 = vector.multi_reduction <maximumf>, %89, %cst_41 [1] : vector<8x3xf32> to vector<8xf32>
    %91 = vector.shape_cast %90 : vector<8xf32> to vector<8x1xf32>
    %92 = vector.broadcast %91 : vector<8x1xf32> to vector<8x3xf32>
    %93 = arith.subf %89, %92 : vector<8x3xf32>
    %94 = math.exp %93 : vector<8x3xf32>
    %cst_42 = arith.constant dense<0.000000e+00> : vector<8xf32>
    %95 = vector.multi_reduction <add>, %94, %cst_42 [1] : vector<8x3xf32> to vector<8xf32>
    %96 = vector.shape_cast %95 : vector<8xf32> to vector<8x1xf32>
    %97 = vector.broadcast %96 : vector<8x1xf32> to vector<8x3xf32>
    %98 = arith.divf %94, %97 : vector<8x3xf32>
    %c0_43 = arith.constant 0 : index
    %c0_44 = arith.constant 0 : index
    %99 = vector.load %arg5[%c0_43, %c0_44] : memref<8x3xf32, #tpu.memory_space<vmem>>, vector<8x3xf32>
    tpu.vector_store %arg5[%c0_43, %c0_44], %98 {strides = array<i32>} : memref<8x3xf32, #tpu.memory_space<vmem>>, vector<8x3xf32>,
    return
  }
}

</mosaic_0001>

<llo_original>
// kernel: tpu_custom_call.1
$region0: #{tpu_custom_call.1}
  #allocation0 [shape = 'u32[]', space=smem, size = 0x4, offset = 0x4, fixed_abs, tag = 'smem constant byte address 0x4 - core index']
  #allocation1 [shape = 'u32[144,128]{1,0:T(1,128)}', space=vmem, size = 0x12000, scoped, tag = 'internal scratch']
  %s0 = inlined_call_operand.vmem [shape: f32[8,16], index: 0, kind: input, shape index: {}]
  %s1 = inlined_call_operand.vmem [shape: f32[112,32], index: 1, kind: input, shape index: {}]
  %s2 = inlined_call_operand.vmem [shape: f32[64,64], index: 2, kind: input, shape index: {}]
  %s3 = inlined_call_operand.vmem [shape: f32[64,3], index: 3, kind: input, shape index: {}]
  %s4 = inlined_call_operand.vmem [shape: f32[17,64], index: 4, kind: input, shape index: {}]
  %s5 = inlined_call_operand.vmem [shape: f32[8,3], index: 5, kind: output, shape index: {}]
  %s6 = sld [smem:[#allocation0]]
  $region30: #{tpu_custom_call.1} parent=0
    _
  %s8 = ssub.s32 1, %s6
  %s9 = scalar_select 0, %s8, %s6
  // Predicated region
  $region2: #{tpu_custom_call.1} parent=0 // pred_check
    _
  $region3: #{tpu_custom_call.1} parent=0 // pred_check_branch
    %11 = sbr.rel (0) target = $region5
  $region4: #{tpu_custom_call.1} parent=0 // pred_region
    _
  $region5: #{tpu_custom_call.1} parent=0 // pred_fallthru
    _
  // Predicated region
  $region6: #{tpu_custom_call.1} parent=0 // pred_check
    _
  $region7: #{tpu_custom_call.1} parent=0 // pred_check_branch
    %13 = sbr.rel (0) target = $region9
  $region8: #{tpu_custom_call.1} parent=0 // pred_region
    _
  $region9: #{tpu_custom_call.1} parent=0 // pred_fallthru
    _
  // Predicated region
  $region10: #{tpu_custom_call.1} parent=0 // pred_check
    _
  $region11: #{tpu_custom_call.1} parent=0 // pred_check_branch
    %15 = sbr.rel (0) target = $region13
  $region12: #{tpu_custom_call.1} parent=0 // pred_region
    _
  $region13: #{tpu_custom_call.1} parent=0 // pred_fallthru
    _
  // Predicated region
  $region14: #{tpu_custom_call.1} parent=0 // pred_check
    _
  $region15: #{tpu_custom_call.1} parent=0 // pred_check_branch
    %17 = sbr.rel (0) target = $region17
  $region16: #{tpu_custom_call.1} parent=0 // pred_region
    _
  $region17: #{tpu_custom_call.1} parent=0 // pred_fallthru
    _
  // Predicated region
  $region18: #{tpu_custom_call.1} parent=0 // pred_check
    _
  $region19: #{tpu_custom_call.1} parent=0 // pred_check_branch
    %19 = sbr.rel (0) target = $region21
  $region20: #{tpu_custom_call.1} parent=0 // pred_region
    _
  $region21: #{tpu_custom_call.1} parent=0 // pred_fallthru
    _
  %v20 = vld [vmem:[%s0] sm:$0xff]
  %v21 = vld [vmem:[%s1] sm:$0xff]
  %v22 = vld [vmem:[%s1 + $0x8] sm:$0xff]
  %v23 = vld [vmem:[%s1 + $0x10] sm:$0xff]
  %v24 = vld [vmem:[%s1 + $0x18] sm:$0xff]
  %v25 = vld [vmem:[%s1 + $0x20] sm:$0xff]
  %v26 = vld [vmem:[%s1 + $0x28] sm:$0xff]
  %v27 = vld [vmem:[%s1 + $0x30] sm:$0xff]
  %v28 = vld [vmem:[%s1 + $0x38] sm:$0xff]
  %v29 = vld [vmem:[%s1 + $0x40] sm:$0xff]
  %v30 = vld [vmem:[%s1 + $0x48] sm:$0xff]
  %v31 = vld [vmem:[%s1 + $0x50] sm:$0xff]
  %v32 = vld [vmem:[%s1 + $0x58] sm:$0xff]
  %v33 = vld [vmem:[%s1 + $0x60] sm:$0xff]
  %v34 = vld [vmem:[%s1 + $0x68] sm:$0xff]
  %v35 = vld [vmem:[%s2] sm:$0xff]
  %v36 = vld [vmem:[%s2 + $0x8] sm:$0xff]
  %v37 = vld [vmem:[%s2 + $0x10] sm:$0xff]
  %v38 = vld [vmem:[%s2 + $0x18] sm:$0xff]
  %v39 = vld [vmem:[%s2 + $0x20] sm:$0xff]
  %v40 = vld [vmem:[%s2 + $0x28] sm:$0xff]
  %v41 = vld [vmem:[%s2 + $0x30] sm:$0xff]
  %v42 = vld [vmem:[%s2 + $0x38] sm:$0xff]
  %v43 = vld [vmem:[%s3] sm:$0xff]
  %v44 = vld [vmem:[%s3 + $0x8] sm:$0xff]
  %v45 = vld [vmem:[%s3 + $0x10] sm:$0xff]
  %v46 = vld [vmem:[%s3 + $0x18] sm:$0xff]
  %v47 = vld [vmem:[%s3 + $0x20] sm:$0xff]
  %v48 = vld [vmem:[%s3 + $0x28] sm:$0xff]
  %v49 = vld [vmem:[%s3 + $0x30] sm:$0xff]
  %v50 = vld [vmem:[%s3 + $0x38] sm:$0xff]
  %v51 = vld [vmem:[%s4] sm:$0xff]
  %v52 = vld [vmem:[%s4 + $0x8] sm:$0x1]
  %v53 = vld [vmem:[%s4 + $0x9] sm:$0x1]
  %v54 = vld [vmem:[%s4 + $0xa] sm:$0x1]
  %v55 = vld [vmem:[%s4 + $0xb] sm:$0x1]
  %v56 = vld [vmem:[%s4 + $0xc] sm:$0x1]
  %v57 = vld [vmem:[%s4 + $0xd] sm:$0x1]
  %v58 = vld [vmem:[%s4 + $0xe] sm:$0x1]
  %v59 = vld [vmem:[%s4 + $0xf] sm:$0x1]
  %v60 = vld [vmem:[%s4 + $0x10] sm:$0x1]
  %vm61 = vcmask 130048
  %v63 = vsel %vm61, %v20, 0
  %65 = vmatprep.subr.mxu0 0.0
  %66 = vmatpush1.msra.mxu0 %v21
  %67 = vmatprep.subr.mxu0 0.0
  %68 = vmatpush1.msra.mxu0 %v22
  %69 = vmatprep.subr.mxu0 0.0
  %70 = vmatpush1.msra.mxu0 0.0
  %71 = vmatprep.subr.mxu0 0.0
  %72 = vmatpush1.msra.mxu0 0.0
  %73 = vmatprep.subr.mxu0 0.0
  %74 = vmatpush1.msra.mxu0 0.0
  %75 = vmatprep.subr.mxu0 0.0
  %76 = vmatpush1.msra.mxu0 0.0
  %77 = vmatprep.subr.mxu0 0.0
  %78 = vmatpush1.msra.mxu0 0.0
  %79 = vmatprep.subr.mxu0 0.0
  %80 = vmatpush1.msra.mxu0 0.0
  %81 = vmatprep.subr.mxu0 0.0
  %82 = vmatpush1.msra.mxu0 0.0
  %83 = vmatprep.subr.mxu0 0.0
  %84 = vmatpush1.msra.mxu0 0.0
  %85 = vmatprep.subr.mxu0 0.0
  %86 = vmatpush1.msra.mxu0 0.0
  %87 = vmatprep.subr.mxu0 0.0
  %88 = vmatpush1.msra.mxu0 0.0
  %89 = vmatprep.subr.mxu0 0.0
  %90 = vmatpush1.msra.mxu0 0.0
  %91 = vmatprep.subr.mxu0 0.0
  %92 = vmatpush1.msra.mxu0 0.0
  %93 = vmatprep.subr.mxu0 0.0
  %94 = vmatpush1.msra.mxu0 0.0
  %95 = vmatprep.subr.mxu0 0.0
  %96 = vmatpush1.msra.mxu0 0.0
  %97 = vmatprep.subr.mxu0 0.0
  %98 = vmatpush1.msra.mxu0 0.0
  %99 = vmatprep.subr.mxu0 0.0
  %100 = vmatpush1.msra.mxu0 0.0
  %101 = vmatprep.subr.mxu0 0.0
  %102 = vmatpush1.msra.mxu0 0.0
  %103 = vmatprep.subr.mxu0 0.0
  %104 = vmatpush1.msra.mxu0 0.0
  %105 = vmatprep.subr.mxu0 0.0
  %106 = vmatpush1.msra.mxu0 0.0
  %107 = vmatprep.subr.mxu0 0.0
  %108 = vmatpush1.msra.mxu0 0.0
  %109 = vmatprep.subr.mxu0 0.0
  %110 = vmatpush1.msra.mxu0 0.0
  %111 = vmatprep.subr.mxu0 0.0
  %112 = vmatpush1.msra.mxu0 0.0
  %113 = vmatprep.subr.mxu0 0.0
  %114 = vmatpush1.msra.mxu0 0.0
  %115 = vmatprep.subr.mxu0 0.0
  %116 = vmatpush1.msra.mxu0 0.0
  %117 = vmatprep.subr.mxu0 0.0
  %118 = vmatpush1.msra.mxu0 0.0
  %119 = vmatprep.subr.mxu0 0.0
  %120 = vmatpush1.msra.mxu0 0.0
  %121 = vmatprep.subr.mxu0 0.0
  %122 = vmatpush1.msra.mxu0 0.0
  %123 = vmatprep.subr.mxu0 0.0
  %124 = vmatpush1.msra.mxu0 0.0
  %125 = vmatprep.subr.mxu0 0.0
  %126 = vmatpush1.msra.mxu0 0.0
  %127 = vmatprep.subr.mxu0 0.0
  %128 = vmatpush1.msra.mxu0 0.0
  %129 = vmatprep.mubr.f32.mxu0 0.0
  %130 = vmatmul.mubr.f32.gmra.mrb[0].mxu0 %v63
  %v131 = vpop.f32.mrb[0].mxu0
  %v132 = vadd.f32 %v51, %v131
  %v133 = vpop.f32.mrb[0].mxu0
  %134 = vdwg.mxu0
  %v135 = vlaneseq
  %v136 = vshrl.u32 %v135, 7
  %v137 = vsub.s32 0, %v136
  %v138 = vrot.slane %v52, %v137
  %vm139 = vcmask 261120
  %v141 = vsel %vm139, %v132, 0
  %143 = vmatprep.subr.mxu0 0.0
  %144 = vmatpush1.msra.mxu0 %v23
  %145 = vmatprep.subr.mxu0 0.0
  %146 = vmatpush1.msra.mxu0 %v24
  %147 = vmatprep.subr.mxu0 0.0
  %148 = vmatpush1.msra.mxu0 %v25
  %149 = vmatprep.subr.mxu0 0.0
  %150 = vmatpush1.msra.mxu0 %v26
  %151 = vmatprep.subr.mxu0 0.0
  %152 = vmatpush1.msra.mxu0 0.0
  %153 = vmatprep.subr.mxu0 0.0
  %154 = vmatpush1.msra.mxu0 0.0
  %155 = vmatprep.subr.mxu0 0.0
  %156 = vmatpush1.msra.mxu0 0.0
  %157 = vmatprep.subr.mxu0 0.0
  %158 = vmatpush1.msra.mxu0 0.0
  %159 = vmatprep.subr.mxu0 0.0
  %160 = vmatpush1.msra.mxu0 0.0
  %161 = vmatprep.subr.mxu0 0.0
  %162 = vmatpush1.msra.mxu0 0.0
  %163 = vmatprep.subr.mxu0 0.0
  %164 = vmatpush1.msra.mxu0 0.0
  %165 = vmatprep.subr.mxu0 0.0
  %166 = vmatpush1.msra.mxu0 0.0
  %167 = vmatprep.subr.mxu0 0.0
  %168 = vmatpush1.msra.mxu0 0.0
  %169 = vmatprep.subr.mxu0 0.0
  %170 = vmatpush1.msra.mxu0 0.0
  %171 = vmatprep.subr.mxu0 0.0
  %172 = vmatpush1.msra.mxu0 0.0
  %173 = vmatprep.subr.mxu0 0.0
  %174 = vmatpush1.msra.mxu0 0.0
  %175 = vmatprep.subr.mxu0 0.0
  %176 = vmatpush1.msra.mxu0 0.0
  %177 = vmatprep.subr.mxu0 0.0
  %178 = vmatpush1.msra.mxu0 0.0
  %179 = vmatprep.subr.mxu0 0.0
  %180 = vmatpush1.msra.mxu0 0.0
  %181 = vmatprep.subr.mxu0 0.0
  %182 = vmatpush1.msra.mxu0 0.0
  %183 = vmatprep.subr.mxu0 0.0
  %184 = vmatpush1.msra.mxu0 0.0
  %185 = vmatprep.subr.mxu0 0.0
  %186 = vmatpush1.msra.mxu0 0.0
  %187 = vmatprep.subr.mxu0 0.0
  %188 = vmatpush1.msra.mxu0 0.0
  %189 = vmatprep.subr.mxu0 0.0
  %190 = vmatpush1.msra.mxu0 0.0
  %191 = vmatprep.subr.mxu0 0.0
  %192 = vmatpush1.msra.mxu0 0.0
  %193 = vmatprep.subr.mxu0 0.0
  %194 = vmatpush1.msra.mxu0 0.0
  %195 = vmatprep.subr.mxu0 0.0
  %196 = vmatpush1.msra.mxu0 0.0
  %197 = vmatprep.subr.mxu0 0.0
  %198 = vmatpush1.msra.mxu0 0.0
  %199 = vmatprep.subr.mxu0 0.0
  %200 = vmatpush1.msra.mxu0 0.0
  %201 = vmatprep.subr.mxu0 0.0
  %202 = vmatpush1.msra.mxu0 0.0
  %203 = vmatprep.subr.mxu0 0.0
  %204 = vmatpush1.msra.mxu0 0.0
  %205 = vmatprep.subr.mxu0 0.0
  %206 = vmatpush1.msra.mxu0 0.0
  %207 = vmatprep.mubr.f32.mxu0 0.0
  %208 = vmatmul.mubr.f32.gmra.mrb[0].mxu0 %v141
  %v209 = vpop.f32.mrb[0].mxu0
  %v210 = vadd.f32 %v138, %v209
  %v211 = vpop.f32.mrb[0].mxu0
  %212 = vdwg.mxu0
  %v213 = vadd.f32 %v132, %v210
  %v214 = vsel %vm139, %v213, 0.0
  %215 = vadd.xlane.f32.xlu0 %v214
  %v216 = vpop.xlane.xlu0 %215
  %v217 = vrcp.pop 32.0
  %v218 = vmul.f32 %v216, %v217
  %v219 = vsub.f32 %v213, %v218
  %v220 = vmul.f32 %v219, %v219
  %v221 = vsel %vm139, %v220, 0.0
  %222 = vadd.xlane.f32.xlu0 %v221
  %v223 = vpop.xlane.xlu0 %222
  %v224 = vmul.f32 %v223, %v217
  %v225 = vadd.f32 %v224, 1e-05
  %v226 = vrsqrt.pop %v225
  %v227 = vmul.f32 %v219, %v226
  %v228 = vlaneseq
  %v229 = vshrl.u32 %v228, 7
  %v230 = vsub.s32 0, %v229
  %v231 = vrot.slane %v53, %v230
  %v232 = vmul.f32 %v227, %v231
  %v233 = vlaneseq
  %v234 = vshrl.u32 %v233, 7
  %v235 = vsub.s32 0, %v234
  %v236 = vrot.slane %v54, %v235
  %v237 = vadd.f32 %v232, %v236
  %v238 = vlaneseq
  %v239 = vshrl.u32 %v238, 7
  %v240 = vsub.s32 0, %v239
  %v241 = vrot.slane %v57, %v240
  %v243 = vsel %vm139, %v237, 0
  %245 = vmatprep.subr.mxu0 0.0
  %246 = vmatpush1.msra.mxu0 %v35
  %247 = vmatprep.subr.mxu0 0.0
  %248 = vmatpush1.msra.mxu0 %v36
  %249 = vmatprep.subr.mxu0 0.0
  %250 = vmatpush1.msra.mxu0 %v37
  %251 = vmatprep.subr.mxu0 0.0
  %252 = vmatpush1.msra.mxu0 %v38
  %253 = vmatprep.subr.mxu0 0.0
  %254 = vmatpush1.msra.mxu0 0.0
  %255 = vmatprep.subr.mxu0 0.0
  %256 = vmatpush1.msra.mxu0 0.0
  %257 = vmatprep.subr.mxu0 0.0
  %258 = vmatpush1.msra.mxu0 0.0
  %259 = vmatprep.subr.mxu0 0.0
  %260 = vmatpush1.msra.mxu0 0.0
  %261 = vmatprep.subr.mxu0 0.0
  %262 = vmatpush1.msra.mxu0 0.0
  %263 = vmatprep.subr.mxu0 0.0
  %264 = vmatpush1.msra.mxu0 0.0
  %265 = vmatprep.subr.mxu0 0.0
  %266 = vmatpush1.msra.mxu0 0.0
  %267 = vmatprep.subr.mxu0 0.0
  %268 = vmatpush1.msra.mxu0 0.0
  %269 = vmatprep.subr.mxu0 0.0
  %270 = vmatpush1.msra.mxu0 0.0
  %271 = vmatprep.subr.mxu0 0.0
  %272 = vmatpush1.msra.mxu0 0.0
  %273 = vmatprep.subr.mxu0 0.0
  %274 = vmatpush1.msra.mxu0 0.0
  %275 = vmatprep.subr.mxu0 0.0
  %276 = vmatpush1.msra.mxu0 0.0
  %277 = vmatprep.subr.mxu0 0.0
  %278 = vmatpush1.msra.mxu0 0.0
  %279 = vmatprep.subr.mxu0 0.0
  %280 = vmatpush1.msra.mxu0 0.0
  %281 = vmatprep.subr.mxu0 0.0
  %282 = vmatpush1.msra.mxu0 0.0
  %283 = vmatprep.subr.mxu0 0.0
  %284 = vmatpush1.msra.mxu0 0.0
  %285 = vmatprep.subr.mxu0 0.0
  %286 = vmatpush1.msra.mxu0 0.0
  %287 = vmatprep.subr.mxu0 0.0
  %288 = vmatpush1.msra.mxu0 0.0
  %289 = vmatprep.subr.mxu0 0.0
  %290 = vmatpush1.msra.mxu0 0.0
  %291 = vmatprep.subr.mxu0 0.0
  %292 = vmatpush1.msra.mxu0 0.0
  %293 = vmatprep.subr.mxu0 0.0
  %294 = vmatpush1.msra.mxu0 0.0
  %295 = vmatprep.subr.mxu0 0.0
  %296 = vmatpush1.msra.mxu0 0.0
  %297 = vmatprep.subr.mxu0 0.0
  %298 = vmatpush1.msra.mxu0 0.0
  %299 = vmatprep.subr.mxu0 0.0
  %300 = vmatpush1.msra.mxu0 0.0
  %301 = vmatprep.subr.mxu0 0.0
  %302 = vmatpush1.msra.mxu0 0.0
  %303 = vmatprep.subr.mxu0 0.0
  %304 = vmatpush1.msra.mxu0 0.0
  %305 = vmatprep.subr.mxu0 0.0
  %306 = vmatpush1.msra.mxu0 0.0
  %307 = vmatprep.subr.mxu0 0.0
  %308 = vmatpush1.msra.mxu0 0.0
  %309 = vmatprep.mubr.f32.mxu0 0.0
  %310 = vmatmul.mubr.f32.gmra.mrb[0].mxu0 %v243
  %v311 = vpop.f32.mrb[0].mxu0
  %v312 = vadd.f32 %v241, %v311
  %v313 = vpop.f32.mrb[0].mxu0
  %314 = vdwg.mxu0
  %v315 = vmax.f32 %v312, 0.0
  %v316 = vlaneseq
  %v317 = vshrl.u32 %v316, 7
  %v318 = vsub.s32 0, %v317
  %v319 = vrot.slane %v58, %v318
  %vm320 = vcmask 523264
  %v322 = vsel %vm320, %v315, 0
  %324 = vmatprep.subr.mxu0 0.0
  %325 = vmatpush1.msra.mxu0 %v27
  %326 = vmatprep.subr.mxu0 0.0
  %327 = vmatpush1.msra.mxu0 %v28
  %328 = vmatprep.subr.mxu0 0.0
  %329 = vmatpush1.msra.mxu0 %v29
  %330 = vmatprep.subr.mxu0 0.0
  %331 = vmatpush1.msra.mxu0 %v30
  %332 = vmatprep.subr.mxu0 0.0
  %333 = vmatpush1.msra.mxu0 %v31
  %334 = vmatprep.subr.mxu0 0.0
  %335 = vmatpush1.msra.mxu0 %v32
  %336 = vmatprep.subr.mxu0 0.0
  %337 = vmatpush1.msra.mxu0 %v33
  %338 = vmatprep.subr.mxu0 0.0
  %339 = vmatpush1.msra.mxu0 %v34
  %340 = vmatprep.subr.mxu0 0.0
  %341 = vmatpush1.msra.mxu0 0.0
  %342 = vmatprep.subr.mxu0 0.0
  %343 = vmatpush1.msra.mxu0 0.0
  %344 = vmatprep.subr.mxu0 0.0
  %345 = vmatpush1.msra.mxu0 0.0
  %346 = vmatprep.subr.mxu0 0.0
  %347 = vmatpush1.msra.mxu0 0.0
  %348 = vmatprep.subr.mxu0 0.0
  %349 = vmatpush1.msra.mxu0 0.0
  %350 = vmatprep.subr.mxu0 0.0
  %351 = vmatpush1.msra.mxu0 0.0
  %352 = vmatprep.subr.mxu0 0.0
  %353 = vmatpush1.msra.mxu0 0.0
  %354 = vmatprep.subr.mxu0 0.0
  %355 = vmatpush1.msra.mxu0 0.0
  %356 = vmatprep.subr.mxu0 0.0
  %357 = vmatpush1.msra.mxu0 0.0
  %358 = vmatprep.subr.mxu0 0.0
  %359 = vmatpush1.msra.mxu0 0.0
  %360 = vmatprep.subr.mxu0 0.0
  %361 = vmatpush1.msra.mxu0 0.0
  %362 = vmatprep.subr.mxu0 0.0
  %363 = vmatpush1.msra.mxu0 0.0
  %364 = vmatprep.subr.mxu0 0.0
  %365 = vmatpush1.msra.mxu0 0.0
  %366 = vmatprep.subr.mxu0 0.0
  %367 = vmatpush1.msra.mxu0 0.0
  %368 = vmatprep.subr.mxu0 0.0
  %369 = vmatpush1.msra.mxu0 0.0
  %370 = vmatprep.subr.mxu0 0.0
  %371 = vmatpush1.msra.mxu0 0.0
  %372 = vmatprep.subr.mxu0 0.0
  %373 = vmatpush1.msra.mxu0 0.0
  %374 = vmatprep.subr.mxu0 0.0
  %375 = vmatpush1.msra.mxu0 0.0
  %376 = vmatprep.subr.mxu0 0.0
  %377 = vmatpush1.msra.mxu0 0.0
  %378 = vmatprep.subr.mxu0 0.0
  %379 = vmatpush1.msra.mxu0 0.0
  %380 = vmatprep.subr.mxu0 0.0
  %381 = vmatpush1.msra.mxu0 0.0
  %382 = vmatprep.subr.mxu0 0.0
  %383 = vmatpush1.msra.mxu0 0.0
  %384 = vmatprep.subr.mxu0 0.0
  %385 = vmatpush1.msra.mxu0 0.0
  %386 = vmatprep.subr.mxu0 0.0
  %387 = vmatpush1.msra.mxu0 0.0
  %388 = vmatprep.mubr.f32.mxu0 0.0
  %389 = vmatmul.mubr.f32.gmra.mrb[0].mxu0 %v322
  %v390 = vpop.f32.mrb[0].mxu0
  %v391 = vadd.f32 %v319, %v390
  %v392 = vpop.f32.mrb[0].mxu0
  %393 = vdwg.mxu0
  %v394 = vadd.f32 %v237, %v391
  %v395 = vsel %vm139, %v394, 0.0
  %396 = vadd.xlane.f32.xlu0 %v395
  %v397 = vpop.xlane.xlu0 %396
  %v398 = vmul.f32 %v397, %v217
  %v399 = vsub.f32 %v394, %v398
  %v400 = vmul.f32 %v399, %v399
  %v401 = vsel %vm139, %v400, 0.0
  %402 = vadd.xlane.f32.xlu0 %v401
  %v403 = vpop.xlane.xlu0 %402
  %v404 = vmul.f32 %v403, %v217
  %v405 = vadd.f32 %v404, 1e-05
  %v406 = vrsqrt.pop %v405
  %v407 = vmul.f32 %v399, %v406
  %v408 = vlaneseq
  %v409 = vshrl.u32 %v408, 7
  %v410 = vsub.s32 0, %v409
  %v411 = vrot.slane %v55, %v410
  %v412 = vmul.f32 %v407, %v411
  %v413 = vlaneseq
  %v414 = vshrl.u32 %v413, 7
  %v415 = vsub.s32 0, %v414
  %v416 = vrot.slane %v56, %v415
  %v417 = vadd.f32 %v412, %v416
  %v418 = vlaneseq
  %v419 = vshrl.u32 %v418, 7
  %v420 = vsub.s32 0, %v419
  %v421 = vrot.slane %v59, %v420
  %v423 = vsel %vm139, %v417, 0
  %425 = vmatprep.subr.mxu0 0.0
  %426 = vmatpush1.msra.mxu0 %v39
  %427 = vmatprep.subr.mxu0 0.0
  %428 = vmatpush1.msra.mxu0 %v40
  %429 = vmatprep.subr.mxu0 0.0
  %430 = vmatpush1.msra.mxu0 %v41
  %431 = vmatprep.subr.mxu0 0.0
  %432 = vmatpush1.msra.mxu0 %v42
  %433 = vmatprep.subr.mxu0 0.0
  %434 = vmatpush1.msra.mxu0 0.0
  %435 = vmatprep.subr.mxu0 0.0
  %436 = vmatpush1.msra.mxu0 0.0
  %437 = vmatprep.subr.mxu0 0.0
  %438 = vmatpush1.msra.mxu0 0.0
  %439 = vmatprep.subr.mxu0 0.0
  %440 = vmatpush1.msra.mxu0 0.0
  %441 = vmatprep.subr.mxu0 0.0
  %442 = vmatpush1.msra.mxu0 0.0
  %443 = vmatprep.subr.mxu0 0.0
  %444 = vmatpush1.msra.mxu0 0.0
  %445 = vmatprep.subr.mxu0 0.0
  %446 = vmatpush1.msra.mxu0 0.0
  %447 = vmatprep.subr.mxu0 0.0
  %448 = vmatpush1.msra.mxu0 0.0
  %449 = vmatprep.subr.mxu0 0.0
  %450 = vmatpush1.msra.mxu0 0.0
  %451 = vmatprep.subr.mxu0 0.0
  %452 = vmatpush1.msra.mxu0 0.0
  %453 = vmatprep.subr.mxu0 0.0
  %454 = vmatpush1.msra.mxu0 0.0
  %455 = vmatprep.subr.mxu0 0.0
  %456 = vmatpush1.msra.mxu0 0.0
  %457 = vmatprep.subr.mxu0 0.0
  %458 = vmatpush1.msra.mxu0 0.0
  %459 = vmatprep.subr.mxu0 0.0
  %460 = vmatpush1.msra.mxu0 0.0
  %461 = vmatprep.subr.mxu0 0.0
  %462 = vmatpush1.msra.mxu0 0.0
  %463 = vmatprep.subr.mxu0 0.0
  %464 = vmatpush1.msra.mxu0 0.0
  %465 = vmatprep.subr.mxu0 0.0
  %466 = vmatpush1.msra.mxu0 0.0
  %467 = vmatprep.subr.mxu0 0.0
  %468 = vmatpush1.msra.mxu0 0.0
  %469 = vmatprep.subr.mxu0 0.0
  %470 = vmatpush1.msra.mxu0 0.0
  %471 = vmatprep.subr.mxu0 0.0
  %472 = vmatpush1.msra.mxu0 0.0
  %473 = vmatprep.subr.mxu0 0.0
  %474 = vmatpush1.msra.mxu0 0.0
  %475 = vmatprep.subr.mxu0 0.0
  %476 = vmatpush1.msra.mxu0 0.0
  %477 = vmatprep.subr.mxu0 0.0
  %478 = vmatpush1.msra.mxu0 0.0
  %479 = vmatprep.subr.mxu0 0.0
  %480 = vmatpush1.msra.mxu0 0.0
  %481 = vmatprep.subr.mxu0 0.0
  %482 = vmatpush1.msra.mxu0 0.0
  %483 = vmatprep.subr.mxu0 0.0
  %484 = vmatpush1.msra.mxu0 0.0
  %485 = vmatprep.subr.mxu0 0.0
  %486 = vmatpush1.msra.mxu0 0.0
  %487 = vmatprep.subr.mxu0 0.0
  %488 = vmatpush1.msra.mxu0 0.0
  %489 = vmatprep.mubr.f32.mxu0 0.0
  %490 = vmatmul.mubr.f32.gmra.mrb[0].mxu0 %v423
  %v491 = vpop.f32.mrb[0].mxu0
  %v492 = vadd.f32 %v421, %v491
  %v493 = vpop.f32.mrb[0].mxu0
  %494 = vdwg.mxu0
  %v495 = vmul.f32 %v492, 0.5
  %v496 = vmul.f32 %v492, 0.70710677
  %v497 = verf.f32.pop %v496
  %v498 = vadd.f32 %v497, 1.0
  %v499 = vmul.f32 %v495, %v498
  %v500 = vlaneseq
  %v501 = vshrl.u32 %v500, 7
  %v502 = vsub.s32 0, %v501
  %v503 = vrot.slane %v60, %v502
  %v505 = vsel %vm320, %v499, 0
  %507 = vmatprep.subr.mxu0 0.0
  %508 = vmatpush1.msra.mxu0 %v43
  %509 = vmatprep.subr.mxu0 0.0
  %510 = vmatpush1.msra.mxu0 %v44
  %511 = vmatprep.subr.mxu0 0.0
  %512 = vmatpush1.msra.mxu0 %v45
  %513 = vmatprep.subr.mxu0 0.0
  %514 = vmatpush1.msra.mxu0 %v46
  %515 = vmatprep.subr.mxu0 0.0
  %516 = vmatpush1.msra.mxu0 %v47
  %517 = vmatprep.subr.mxu0 0.0
  %518 = vmatpush1.msra.mxu0 %v48
  %519 = vmatprep.subr.mxu0 0.0
  %520 = vmatpush1.msra.mxu0 %v49
  %521 = vmatprep.subr.mxu0 0.0
  %522 = vmatpush1.msra.mxu0 %v50
  %523 = vmatprep.subr.mxu0 0.0
  %524 = vmatpush1.msra.mxu0 0.0
  %525 = vmatprep.subr.mxu0 0.0
  %526 = vmatpush1.msra.mxu0 0.0
  %527 = vmatprep.subr.mxu0 0.0
  %528 = vmatpush1.msra.mxu0 0.0
  %529 = vmatprep.subr.mxu0 0.0
  %530 = vmatpush1.msra.mxu0 0.0
  %531 = vmatprep.subr.mxu0 0.0
  %532 = vmatpush1.msra.mxu0 0.0
  %533 = vmatprep.subr.mxu0 0.0
  %534 = vmatpush1.msra.mxu0 0.0
  %535 = vmatprep.subr.mxu0 0.0
  %536 = vmatpush1.msra.mxu0 0.0
  %537 = vmatprep.subr.mxu0 0.0
  %538 = vmatpush1.msra.mxu0 0.0
  %539 = vmatprep.subr.mxu0 0.0
  %540 = vmatpush1.msra.mxu0 0.0
  %541 = vmatprep.subr.mxu0 0.0
  %542 = vmatpush1.msra.mxu0 0.0
  %543 = vmatprep.subr.mxu0 0.0
  %544 = vmatpush1.msra.mxu0 0.0
  %545 = vmatprep.subr.mxu0 0.0
  %546 = vmatpush1.msra.mxu0 0.0
  %547 = vmatprep.subr.mxu0 0.0
  %548 = vmatpush1.msra.mxu0 0.0
  %549 = vmatprep.subr.mxu0 0.0
  %550 = vmatpush1.msra.mxu0 0.0
  %551 = vmatprep.subr.mxu0 0.0
  %552 = vmatpush1.msra.mxu0 0.0
  %553 = vmatprep.subr.mxu0 0.0
  %554 = vmatpush1.msra.mxu0 0.0
  %555 = vmatprep.subr.mxu0 0.0
  %556 = vmatpush1.msra.mxu0 0.0
  %557 = vmatprep.subr.mxu0 0.0
  %558 = vmatpush1.msra.mxu0 0.0
  %559 = vmatprep.subr.mxu0 0.0
  %560 = vmatpush1.msra.mxu0 0.0
  %561 = vmatprep.subr.mxu0 0.0
  %562 = vmatpush1.msra.mxu0 0.0
  %563 = vmatprep.subr.mxu0 0.0
  %564 = vmatpush1.msra.mxu0 0.0
  %565 = vmatprep.subr.mxu0 0.0
  %566 = vmatpush1.msra.mxu0 0.0
  %567 = vmatprep.subr.mxu0 0.0
  %568 = vmatpush1.msra.mxu0 0.0
  %569 = vmatprep.subr.mxu0 0.0
  %570 = vmatpush1.msra.mxu0 0.0
  %571 = vmatprep.mubr.f32.mxu0 0.0
  %572 = vmatmul.mubr.f32.gmra.mrb[0].mxu0 %v505
  %v573 = vpop.f32.mrb[0].mxu0
  %v574 = vadd.f32 %v503, %v573
  %v575 = vpop.f32.mrb[0].mxu0
  %576 = vdwg.mxu0
  %vm577 = vcmask 23552
  %v578 = vsel %vm577, %v574, -inf
  %579 = vmax.xlane.f32.xlu0 %v578
  %v580 = vpop.xlane.xlu0 %579
  %v581 = vsub.f32 %v574, %v580
  %v582 = vmul.f32 %v581, 1.442695
  %v583 = vpow.pop %v582
  %v584 = vsel %vm577, %v583, 0.0
  %585 = vadd.xlane.f32.xlu0 %v584
  %v586 = vpop.xlane.xlu0 %585
  %v587 = vrcp.pop %v586
  %v588 = vmul.f32 %v583, %v587
  %589 = vst.msk [vmem:[%s5] sm:$0xff] %vm577, %v588
  // Predicated region
  $region22: #{tpu_custom_call.1} parent=0 // pred_check
    _
  $region23: #{tpu_custom_call.1} parent=0 // pred_check_branch
    %591 = sbr.rel (0) target = $region25
  $region24: #{tpu_custom_call.1} parent=0 // pred_region
    _
  $region25: #{tpu_custom_call.1} parent=0 // pred_fallthru
    _
  // Predicated region
  $region26: #{tpu_custom_call.1} parent=0 // pred_check
    _
  $region27: #{tpu_custom_call.1} parent=0 // pred_check_branch
    %593 = sbr.rel (0) target = $region29
  $region28: #{tpu_custom_call.1} parent=0 // pred_region
    _
  $region29: #{tpu_custom_call.1} parent=0 // pred_fallthru
    _

</llo_original>
